<compile_context>
chip_gen: v6e
topology: v6e:2x2x1
jax: 0.10.0
libtpu: 0.0.40
codegen_flags: <defaults>
</compile_context>

<pallas_src>
import functools

import jax
import jax.numpy as jnp
from jax.experimental import pallas as pl
from jax.experimental.pallas import tpu as pltpu


def _mm_f32(a, b, ca, cb):
    """dot_general with f32 accumulation; (ca, cb) are the contracting dims."""
    return jax.lax.dot_general(
        a, b, (((ca,), (cb,)), ((), ())), preferred_element_type=jnp.float32)


def _attention_kernel(x_ref, wqkv_ref, bqkv_ref, wout_ref, bout_ref, o_ref,
                      *scratch, n_heads, d_k, scale):
    # x_ref:    (1, C, HW)   channel-major (C on sublanes, tokens on lanes), f32
    # wqkv_ref: (3*nh*dk, C) PyTorch Linear weight layout, pre-cast bf16
    # bqkv_ref: (3*nh*dk, 1) f32
    # wout_ref: (C, nh*dk)   bf16
    # bout_ref: (C, 1)       f32
    # o_ref:    (1, C, HW)   f32
    # scratch:  optional VMEM (nh*dk, HW) f32 (only allocated for n_heads > 1)
    r_scratch = scratch[0] if scratch else None

    x = x_ref[0]                                   # (C, HW) f32 (kept for residual)
    wqkv = wqkv_ref[...]                           # bf16
    wout = wout_ref[...]                           # bf16
    bqkv = bqkv_ref[...]                           # (F3, 1) f32, lane-broadcast once
    bout = bout_ref[...]                           # (C, 1)  f32
    hw = x.shape[1]

    # qkv^T = Wqkv @ x + b  -> (3*nh*dk, HW); MXU with f32 accumulation.
    qkv = _mm_f32(wqkv, x.astype(jnp.bfloat16), 1, 0) + bqkv

    ones_keys = jnp.ones((1, hw), dtype=jnp.bfloat16)   # for row-sums on the MXU

    rt_all = None
    for h in range(n_heads):
        off = 3 * d_k * h
        qt = qkv[off:off + d_k]                    # (dk, HW) = Q^T
        kt = qkv[off + d_k:off + 2 * d_k]          # (dk, HW) = K^T
        vt = qkv[off + 2 * d_k:off + 3 * d_k]      # (dk, HW) = V^T

        # Fold the softmax scale into q^T (8 vregs) fused with the bf16 cast,
        # instead of scaling the (HW, HW) scores (64 vregs).
        q_s = (qt * scale).astype(jnp.bfloat16)
        k_b = kt.astype(jnp.bfloat16)

        # S[i, j] = sum_d Q[i, d] K[j, d]
        s = _mm_f32(q_s, k_b, 0, 0)                # (HW, HW) f32
        s = s - jnp.max(s, axis=1, keepdims=True)  # numerically-stable softmax
        p = jnp.exp(s).astype(jnp.bfloat16)        # unnormalized probs for the MXU

        # R^T[d, i] = sum_j V^T[d, j] P[i, j]
        rt = _mm_f32(vt.astype(jnp.bfloat16), p, 1, 1)        # (dk, HW) f32
        # Per-query row sums of P, directly in lane layout (1, HW), via a
        # ones-vector matmul (MXU has plenty of slack); normalize the small
        # (dk, HW) result instead of the (HW, HW) probabilities.
        denom = _mm_f32(ones_keys, p, 1, 1)                   # (1, HW) f32
        rt = rt * pl.reciprocal(denom, approx=True)

        if n_heads == 1:
            rt_all = rt
        else:
            # Sublane-aligned write (d_k multiple of 8): no concatenate relayout.
            r_scratch[pl.ds(h * d_k, d_k), :] = rt

    if n_heads > 1:
        rt_all = r_scratch[...]

    # out^T = Wout @ R^T + b_out + x^T   (residual stays f32)
    o_ref[0] = _mm_f32(wout, rt_all.astype(jnp.bfloat16), 1, 0) + bout + x


def attention_block_forward(x, params, *, n_heads=1, d_k=None):
    """Pallas implementation of AttentionBlock.forward (NCHW in, NCHW out)."""
    B, C, H, W = x.shape
    if d_k is None:
        d_k = C
    HW = H * W
    F3 = 3 * n_heads * d_k
    nd = n_heads * d_k

    xr = x.reshape(B, C, HW)                          # free view, no transpose copy
    wqkv = params['proj_w'].astype(jnp.bfloat16)      # pre-cast once, outside kernel
    wout = params['out_w'].astype(jnp.bfloat16)
    bqkv = params['proj_b'].reshape(-1, 1)            # f32
    bout = params['out_b'].reshape(-1, 1)             # f32

    scratch_shapes = []
    if n_heads > 1:
        scratch_shapes = [pltpu.VMEM((nd, HW), jnp.float32)]

    flops = B * (2 * F3 * C * HW                       # qkv projection
                 + n_heads * (4 * HW * HW * d_k)       # QK^T and PV
                 + 2 * C * nd * HW)                    # output projection
    transcendentals = B * n_heads * HW * HW            # softmax exp
    bytes_accessed = (2 * B * C * HW * 4               # x in + out (f32)
                      + (F3 * C + C * nd) * 2          # bf16 weights
                      + (F3 + C) * 4)                  # biases

    out = pl.pallas_call(
        functools.partial(_attention_kernel, n_heads=n_heads, d_k=d_k,
                          scale=d_k ** -0.5),
        out_shape=jax.ShapeDtypeStruct((B, C, HW), jnp.float32),
        grid=(B,),
        in_specs=[
            pl.BlockSpec((1, C, HW), lambda b: (b, 0, 0)),   # per-batch block
            pl.BlockSpec((F3, C), lambda b: (0, 0)),          # weights: VMEM-resident
            pl.BlockSpec((F3, 1), lambda b: (0, 0)),
            pl.BlockSpec((C, nd), lambda b: (0, 0)),
            pl.BlockSpec((C, 1), lambda b: (0, 0)),
        ],
        out_specs=pl.BlockSpec((1, C, HW), lambda b: (b, 0, 0)),
        scratch_shapes=scratch_shapes,
        compiler_params=pltpu.CompilerParams(
            dimension_semantics=("parallel",),        # megacore: batch across TCs
            vmem_limit_bytes=32 * 1024 * 1024),
        cost_estimate=pl.CostEstimate(flops=int(flops),
                                      transcendentals=int(transcendentals),
                                      bytes_accessed=int(bytes_accessed)),
    )(xr, wqkv, bqkv, wout, bout)
    return out.reshape(B, C, H, W)


def attention_block_reference(x, params, *, n_heads=1, d_k=None):
    """Pure-JAX port of the PyTorch forward (correctness reference)."""
    B, C, H, W = x.shape
    if d_k is None:
        d_k = C
    xs = x.reshape(B, C, H * W).transpose(0, 2, 1)              # (B, HW, C)
    qkv = xs @ params['proj_w'].T + params['proj_b']            # (B, HW, 3*nh*dk)
    qkv = qkv.reshape(B, H * W, n_heads, 3 * d_k)
    q, k, v = qkv[..., :d_k], qkv[..., d_k:2 * d_k], qkv[..., 2 * d_k:]
    attn = jnp.einsum('bihd,bjhd->bijh', q, k) * (d_k ** -0.5)
    attn = jax.nn.softmax(attn, axis=2)
    res = jnp.einsum('bijh,bjhd->bihd', attn, v)
    res = res.reshape(B, H * W, n_heads * d_k)
    res = res @ params['out_w'].T + params['out_b'] + xs
    return res.transpose(0, 2, 1).reshape(B, C, H, W)


def init_params(key, n_channels, n_heads=1, d_k=None):
    if d_k is None:
        d_k = n_channels
    k1, k2, k3, k4 = jax.random.split(key, 4)
    s = 0.05
    return {
        'proj_w': s * jax.random.normal(k1, (3 * n_heads * d_k, n_channels),
                                        dtype=jnp.float32),
        'proj_b': s * jax.random.normal(k2, (3 * n_heads * d_k,),
                                        dtype=jnp.float32),
        'out_w': s * jax.random.normal(k3, (n_channels, n_heads * d_k),
                                       dtype=jnp.float32),
        'out_b': s * jax.random.normal(k4, (n_channels,), dtype=jnp.float32),
    }


if __name__ == "__main__":
    # n_channels=32 so the (unused-in-forward) GroupNorm(n_groups=32) would be
    # constructible in the reference module; batch=2, spatial=16x16 -> HW=256.
    B, C, H, W = 2, 32, 16, 16
    key = jax.random.PRNGKey(0)
    kp, kx = jax.random.split(key)
    params = init_params(kp, C)
    x = jax.random.normal(kx, (B, C, H, W), dtype=jnp.float32)

    fwd = jax.jit(attention_block_forward)
    out = jax.block_until_ready(fwd(x, params))
    assert out.shape == (B, C, H, W)
    assert bool(jnp.all(jnp.isfinite(out)))

    # correctness vs pure-JAX reference (bf16 MXU inputs, f32 accumulation)
    ref = attention_block_reference(x, params)
    max_err = float(jnp.max(jnp.abs(out - ref)))
    assert max_err < 2e-2, f"mismatch vs reference: {max_err}"
    print("KERNEL_OK")
</pallas_src>

<mosaic_0001>
module attributes {stable_mosaic.version = 11 : i64} {
  func.func @_attention_kernel(%arg0: i32, %arg1: memref<1x32x256xf32, #tpu.memory_space<vmem>>, %arg2: memref<96x32xbf16, #tpu.memory_space<vmem>>, %arg3: memref<96x1xf32, #tpu.memory_space<vmem>>, %arg4: memref<32x32xbf16, #tpu.memory_space<vmem>>, %arg5: memref<32x1xf32, #tpu.memory_space<vmem>>, %arg6: memref<1x32x256xf32, #tpu.memory_space<vmem>>) attributes {dimension_semantics = [#tpu.dimension_semantics<parallel>], iteration_bounds = array<i64: 2>, scalar_prefetch = 0 : i64, scratch_operands = 0 : i64, tpu.core_type = #tpu.core_type<tc>, window_params = [{transform_indices = @transform_0, window_bounds = array<i64: 1, 32, 256>}, {pipeline_mode = #tpu.pipeline_mode<synchronous>, transform_indices = @transform_1, window_bounds = array<i64: 96, 32>}, {pipeline_mode = #tpu.pipeline_mode<synchronous>, transform_indices = @transform_2, window_bounds = array<i64: 96, 1>}, {pipeline_mode = #tpu.pipeline_mode<synchronous>, transform_indices = @transform_3, window_bounds = array<i64: 32, 32>}, {pipeline_mode = #tpu.pipeline_mode<synchronous>, transform_indices = @transform_4, window_bounds = array<i64: 32, 1>}, {transform_indices = @transform_5, window_bounds = array<i64: 1, 32, 256>}]} {
    %c0 = arith.constant 0 : index
    %c0_0 = arith.constant 0 : index
    %c0_1 = arith.constant 0 : index
    %0 = vector.load %arg1[%c0, %c0_0, %c0_1] : memref<1x32x256xf32, #tpu.memory_space<vmem>>, vector<1x32x256xf32>
    %1 = vector.shape_cast %0 : vector<1x32x256xf32> to vector<32x256xf32>
    %c0_2 = arith.constant 0 : index
    %c0_3 = arith.constant 0 : index
    %2 = vector.load %arg2[%c0_2, %c0_3] : memref<96x32xbf16, #tpu.memory_space<vmem>>, vector<96x32xbf16>
    %c0_4 = arith.constant 0 : index
    %c0_5 = arith.constant 0 : index
    %3 = vector.load %arg4[%c0_4, %c0_5] : memref<32x32xbf16, #tpu.memory_space<vmem>>, vector<32x32xbf16>
    %c0_6 = arith.constant 0 : index
    %c0_7 = arith.constant 0 : index
    %4 = vector.load %arg3[%c0_6, %c0_7] : memref<96x1xf32, #tpu.memory_space<vmem>>, vector<96x1xf32>
    %c0_8 = arith.constant 0 : index
    %c0_9 = arith.constant 0 : index
    %5 = vector.load %arg5[%c0_8, %c0_9] : memref<32x1xf32, #tpu.memory_space<vmem>>, vector<32x1xf32>
    %6 = arith.truncf %1 : vector<32x256xf32> to vector<32x256xbf16>
    %cst = arith.constant dense<0.000000e+00> : vector<96x256xf32>
    %7 = tpu.matmul %2, %6, %cst {dimension_numbers = #tpu.dot_dimension_numbers<[1], [0], [0], [1], [0, 0, 1, 1], [], []>} : vector<96x32xbf16>, vector<32x256xbf16>, vector<96x256xf32> -> vector<96x256xf32>
    %8 = vector.broadcast %4 : vector<96x1xf32> to vector<96x256xf32>
    %9 = arith.addf %7, %8 : vector<96x256xf32>
    %cst_10 = arith.constant 1.000000e+00 : bf16
    %10 = vector.broadcast %cst_10 : bf16 to vector<1x256xbf16>
    %11 = vector.extract_strided_slice %9 {offsets = [0, 0], sizes = [32, 256], strides = [1, 1]} : vector<96x256xf32> to vector<32x256xf32>
    %12 = vector.extract_strided_slice %9 {offsets = [32, 0], sizes = [32, 256], strides = [1, 1]} : vector<96x256xf32> to vector<32x256xf32>
    %13 = vector.extract_strided_slice %9 {offsets = [64, 0], sizes = [32, 256], strides = [1, 1]} : vector<96x256xf32> to vector<32x256xf32>
    %cst_11 = arith.constant 0.176776692 : f32
    %14 = vector.broadcast %cst_11 : f32 to vector<32x256xf32>
    %15 = arith.mulf %11, %14 : vector<32x256xf32>
    %16 = arith.truncf %15 : vector<32x256xf32> to vector<32x256xbf16>
    %17 = arith.truncf %12 : vector<32x256xf32> to vector<32x256xbf16>
    %cst_12 = arith.constant dense<0.000000e+00> : vector<256x256xf32>
    %18 = tpu.matmul %16, %17, %cst_12 {dimension_numbers = #tpu.dot_dimension_numbers<[0], [0], [1], [1], [0, 1, 1, 1], [], []>} : vector<32x256xbf16>, vector<32x256xbf16>, vector<256x256xf32> -> vector<256x256xf32>
    %cst_13 = arith.constant dense<0xFF800000> : vector<256xf32>
    %19 = vector.multi_reduction <maximumf>, %18, %cst_13 [1] : vector<256x256xf32> to vector<256xf32>
    %20 = vector.shape_cast %19 : vector<256xf32> to vector<256x1xf32>
    %21 = vector.broadcast %20 : vector<256x1xf32> to vector<256x256xf32>
    %22 = arith.subf %18, %21 : vector<256x256xf32>
    %23 = math.exp %22 : vector<256x256xf32>
    %24 = arith.truncf %23 : vector<256x256xf32> to vector<256x256xbf16>
    %25 = arith.truncf %13 : vector<32x256xf32> to vector<32x256xbf16>
    %cst_14 = arith.constant dense<0.000000e+00> : vector<32x256xf32>
    %26 = tpu.matmul %25, %24, %cst_14 {dimension_numbers = #tpu.dot_dimension_numbers<[1], [1], [0], [0], [0, 0, 1, 0], [], []>} : vector<32x256xbf16>, vector<256x256xbf16>, vector<32x256xf32> -> vector<32x256xf32>
    %cst_15 = arith.constant dense<0.000000e+00> : vector<1x256xf32>
    %27 = tpu.matmul %10, %24, %cst_15 {dimension_numbers = #tpu.dot_dimension_numbers<[1], [1], [0], [0], [0, 0, 1, 0], [], []>} : vector<1x256xbf16>, vector<256x256xbf16>, vector<1x256xf32> -> vector<1x256xf32>
    %28 = tpu.reciprocal %27 {approx = true} : vector<1x256xf32> -> vector<1x256xf32>
    %29 = vector.broadcast %28 : vector<1x256xf32> to vector<32x256xf32>
    %30 = arith.mulf %26, %29 : vector<32x256xf32>
    %31 = arith.truncf %30 : vector<32x256xf32> to vector<32x256xbf16>
    %cst_16 = arith.constant dense<0.000000e+00> : vector<32x256xf32>
    %32 = tpu.matmul %3, %31, %cst_16 {dimension_numbers = #tpu.dot_dimension_numbers<[1], [0], [0], [1], [0, 0, 1, 1], [], []>} : vector<32x32xbf16>, vector<32x256xbf16>, vector<32x256xf32> -> vector<32x256xf32>
    %33 = vector.broadcast %5 : vector<32x1xf32> to vector<32x256xf32>
    %34 = arith.addf %32, %33 : vector<32x256xf32>
    %35 = arith.addf %34, %1 : vector<32x256xf32>
    %c0_17 = arith.constant 0 : index
    %c0_18 = arith.constant 0 : index
    %c0_19 = arith.constant 0 : index
    %36 = vector.load %arg6[%c0_17, %c0_18, %c0_19] : memref<1x32x256xf32, #tpu.memory_space<vmem>>, vector<1x32x256xf32>
    %37 = vector.shape_cast %36 : vector<1x32x256xf32> to vector<32x256xf32>
    %38 = vector.shape_cast %35 : vector<32x256xf32> to vector<1x32x256xf32>
    tpu.vector_store %arg6[%c0_17, %c0_18, %c0_19], %38 {strides = array<i32>} : memref<1x32x256xf32, #tpu.memory_space<vmem>>, vector<1x32x256xf32>,
    return
  }
  func.func @transform_0(%arg0: i32) -> (i32, i32, i32) {
    %c0_i32 = arith.constant 0 : i32
    %c0_i32_0 = arith.constant 0 : i32
    %c0_i32_1 = arith.constant 0 : i32
    return %arg0, %c0_i32, %c0_i32_0 : i32, i32, i32
  }
  func.func @transform_1(%arg0: i32) -> (i32, i32) {
    %c0_i32 = arith.constant 0 : i32
    %c0_i32_0 = arith.constant 0 : i32
    %c0_i32_1 = arith.constant 0 : i32
    return %c0_i32, %c0_i32_0 : i32, i32
  }
  func.func @transform_2(%arg0: i32) -> (i32, i32) {
    %c0_i32 = arith.constant 0 : i32
    %c0_i32_0 = arith.constant 0 : i32
    %c0_i32_1 = arith.constant 0 : i32
    return %c0_i32, %c0_i32_0 : i32, i32
  }
  func.func @transform_3(%arg0: i32) -> (i32, i32) {
    %c0_i32 = arith.constant 0 : i32
    %c0_i32_0 = arith.constant 0 : i32
    %c0_i32_1 = arith.constant 0 : i32
    return %c0_i32, %c0_i32_0 : i32, i32
  }
  func.func @transform_4(%arg0: i32) -> (i32, i32) {
    %c0_i32 = arith.constant 0 : i32
    %c0_i32_0 = arith.constant 0 : i32
    %c0_i32_1 = arith.constant 0 : i32
    return %c0_i32, %c0_i32_0 : i32, i32
  }
  func.func @transform_5(%arg0: i32) -> (i32, i32, i32) {
    %c0_i32 = arith.constant 0 : i32
    %c0_i32_0 = arith.constant 0 : i32
    %c0_i32_1 = arith.constant 0 : i32
    return %arg0, %c0_i32, %c0_i32_0 : i32, i32, i32
  }
}

</mosaic_0001>

<llo_original>
// kernel: attention_block_forward.1
$region0: #{attention_block_forward.1}
  #allocation0 [shape = 'u32[]', space=smem, size = 0x4, offset = 0x4, fixed_abs, tag = 'smem constant byte address 0x4 - core index']
  #allocation1 [shape = 'u32[144,128]{1,0:T(1,128)}', space=vmem, size = 0x12000, scoped, tag = 'internal scratch']
  %s0 = inlined_call_operand.vmem [shape: f32[2,32,256], index: 0, kind: input, shape index: {}]
  %s1 = inlined_call_operand.vmem [shape: bf16[96,32], index: 1, kind: input, shape index: {}]
  %s2 = inlined_call_operand.vmem [shape: f32[96,1], index: 2, kind: input, shape index: {}]
  %s3 = inlined_call_operand.vmem [shape: bf16[32,32], index: 3, kind: input, shape index: {}]
  %s4 = inlined_call_operand.vmem [shape: f32[32,1], index: 4, kind: input, shape index: {}]
  %s5 = inlined_call_operand.vmem [shape: f32[2,32,256], index: 5, kind: output, shape index: {}]
  %s6 = sld [smem:[#allocation0]]
  $region53: #{attention_block_forward.1} parent=0
    _
  %s8 = ssub.s32 1, %s6
  %s9 = scalar_select 0, %s8, %s6
  loop: start=0, step=1, limit=4
  $region2: #{attention_block_forward.1} parent=0 // loop_pre_header
    _
  $region3: #{attention_block_forward.1} parent=0 // loop_header
    %s11 = sphi 0, %s15
    %p12 = scmp.ge.s32.totalorder %s11, 4
    %s21 = sphi 0, %s23
    %s24 = sphi 0, %s21
    %s25 = sphi 0, %s24
    %s41 = sphi 0, %s25
    %s45 = sphi 0, %s45
    %s47 = sphi 0, %s45
    %s48 = sphi 0, %s47
    %s62 = sphi 0, %s48
    %s66 = sphi 0, %s66
    %s68 = sphi 0, %s66
    %s69 = sphi 0, %s68
    %s83 = sphi 0, %s69
    %s87 = sphi 0, %s87
    %s89 = sphi 0, %s87
    %s90 = sphi 0, %s89
    %s104 = sphi 0, %s90
    %s108 = sphi 0, %s108
    %s110 = sphi 0, %s108
    %s111 = sphi 0, %s110
    %s125 = sphi 0, %s111
    %s131 = sphi 0, %s133
    %s134 = sphi 0, %s131
    %s135 = sphi 0, %s134
    %s151 = sphi 0, %s135
  $region4: #{attention_block_forward.1} parent=0 // loop_header_branch
    %14 = sbr.rel (%p12) target = $region8
  $region5: #{attention_block_forward.1} parent=0 // loop_body
    %s16 = ssub.s32 %s11, 1
    %s17 = ssub.s32 %s11, 2
    %s18 = sadd.s32 %s11, 1
    %s19 = ssub.s32 %s11, %s18
    %p20 = scmp.eq.s32.totalorder %s19, 0
    %s22 = sadd.s32 %s21, 1
    %s23 = scalar_select %p20, %s21, %s22
    %p26 = pneg %p20
    %p27 = scmp.eq.s32.totalorder %s11, 1
    %p28 = por %p26, %p27
    %p29 = scmp.ne.s32.totalorder %s21, %s24
    %p30 = scmp.eq.s32.totalorder %s11, 0
    %p31 = por %p29, %p30
    %p32 = scmp.ne.s32.totalorder %s21, %s24
    %p33 = scmp.eq.s32.totalorder %s16, 1
    %p34 = por %p32, %p33
    %p35 = scmp.ne.s32.totalorder %s24, %s25
    %p36 = scmp.eq.s32.totalorder %s16, 0
    %p37 = por %p35, %p36
    %p38 = scmp.ne.s32.totalorder %s24, %s25
    %p39 = scmp.eq.s32.totalorder %s17, 1
    %p40 = por %p38, %p39
    %p42 = scmp.ne.s32.totalorder %s25, %s41
    %p43 = scmp.eq.s32.totalorder %s17, 0
    %p44 = por %p42, %p43
    %s46 = sadd.s32 %s45, 1
    %p49 = scmp.eq.s32.totalorder %s11, 1
    %p50 = scmp.ne.s32.totalorder %s45, %s47
    %p51 = scmp.eq.s32.totalorder %s11, 0
    %p52 = por %p50, %p51
    %p53 = scmp.ne.s32.totalorder %s45, %s47
    %p54 = scmp.eq.s32.totalorder %s16, 1
    %p55 = por %p53, %p54
    %p56 = scmp.ne.s32.totalorder %s47, %s48
    %p57 = scmp.eq.s32.totalorder %s16, 0
    %p58 = por %p56, %p57
    %p59 = scmp.ne.s32.totalorder %s47, %s48
    %p60 = scmp.eq.s32.totalorder %s17, 1
    %p61 = por %p59, %p60
    %p63 = scmp.ne.s32.totalorder %s48, %s62
    %p64 = scmp.eq.s32.totalorder %s17, 0
    %p65 = por %p63, %p64
    %s67 = sadd.s32 %s66, 1
    %p70 = scmp.eq.s32.totalorder %s11, 1
    %p71 = scmp.ne.s32.totalorder %s66, %s68
    %p72 = scmp.eq.s32.totalorder %s11, 0
    %p73 = por %p71, %p72
    %p74 = scmp.ne.s32.totalorder %s66, %s68
    %p75 = scmp.eq.s32.totalorder %s16, 1
    %p76 = por %p74, %p75
    %p77 = scmp.ne.s32.totalorder %s68, %s69
    %p78 = scmp.eq.s32.totalorder %s16, 0
    %p79 = por %p77, %p78
    %p80 = scmp.ne.s32.totalorder %s68, %s69
    %p81 = scmp.eq.s32.totalorder %s17, 1
    %p82 = por %p80, %p81
    %p84 = scmp.ne.s32.totalorder %s69, %s83
    %p85 = scmp.eq.s32.totalorder %s17, 0
    %p86 = por %p84, %p85
    %s88 = sadd.s32 %s87, 1
    %p91 = scmp.eq.s32.totalorder %s11, 1
    %p92 = scmp.ne.s32.totalorder %s87, %s89
    %p93 = scmp.eq.s32.totalorder %s11, 0
    %p94 = por %p92, %p93
    %p95 = scmp.ne.s32.totalorder %s87, %s89
    %p96 = scmp.eq.s32.totalorder %s16, 1
    %p97 = por %p95, %p96
    %p98 = scmp.ne.s32.totalorder %s89, %s90
    %p99 = scmp.eq.s32.totalorder %s16, 0
    %p100 = por %p98, %p99
    %p101 = scmp.ne.s32.totalorder %s89, %s90
    %p102 = scmp.eq.s32.totalorder %s17, 1
    %p103 = por %p101, %p102
    %p105 = scmp.ne.s32.totalorder %s90, %s104
    %p106 = scmp.eq.s32.totalorder %s17, 0
    %p107 = por %p105, %p106
    %s109 = sadd.s32 %s108, 1
    %p112 = scmp.eq.s32.totalorder %s11, 1
    %p113 = scmp.ne.s32.totalorder %s108, %s110
    %p114 = scmp.eq.s32.totalorder %s11, 0
    %p115 = por %p113, %p114
    %p116 = scmp.ne.s32.totalorder %s108, %s110
    %p117 = scmp.eq.s32.totalorder %s16, 1
    %p118 = por %p116, %p117
    %p119 = scmp.ne.s32.totalorder %s110, %s111
    %p120 = scmp.eq.s32.totalorder %s16, 0
    %p121 = por %p119, %p120
    %p122 = scmp.ne.s32.totalorder %s110, %s111
    %p123 = scmp.eq.s32.totalorder %s17, 1
    %p124 = por %p122, %p123
    %p126 = scmp.ne.s32.totalorder %s111, %s125
    %p127 = scmp.eq.s32.totalorder %s17, 0
    %p128 = por %p126, %p127
    %s129 = ssub.s32 %s11, %s18
    %p130 = scmp.eq.s32.totalorder %s129, 0
    %s132 = sadd.s32 %s131, 1
    %s133 = scalar_select %p130, %s131, %s132
    %p136 = pneg %p130
    %p137 = scmp.eq.s32.totalorder %s11, 1
    %p138 = por %p136, %p137
    %p139 = scmp.ne.s32.totalorder %s131, %s134
    %p140 = scmp.eq.s32.totalorder %s11, 0
    %p141 = por %p139, %p140
    %p142 = scmp.ne.s32.totalorder %s131, %s134
    %p143 = scmp.eq.s32.totalorder %s16, 1
    %p144 = por %p142, %p143
    %p145 = scmp.ne.s32.totalorder %s134, %s135
    %p146 = scmp.eq.s32.totalorder %s16, 0
    %p147 = por %p145, %p146
    %p148 = scmp.ne.s32.totalorder %s134, %s135
    %p149 = scmp.eq.s32.totalorder %s17, 1
    %p150 = por %p148, %p149
    %p152 = scmp.ne.s32.totalorder %s135, %s151
    %p153 = scmp.eq.s32.totalorder %s17, 0
    %p154 = por %p152, %p153
    %p155 = scmp.le.s32.totalorder 1, %s11
    %p156 = scmp.lt.s32.totalorder %s11, 3
    %p157 = pnand %p155, %p156
    %p158 = pneg %p157
    // Predicated region
    $region9: #{attention_block_forward.1} parent=5 // pred_check
      _
    $region10: #{attention_block_forward.1} parent=5 // pred_check_branch
      %160 = sbr.rel (%p157) target = $region12
    $region11: #{attention_block_forward.1} parent=5 // pred_region
      %s161 = ssub.s32 %s11, 1
      // Predicated region
      $region13: #{attention_block_forward.1} parent=11 // pred_check
        %p162 = pneg %p58
      $region14: #{attention_block_forward.1} parent=11 // pred_check_branch
        %164 = sbr.rel (%p162) target = $region16
      $region15: #{attention_block_forward.1} parent=11 // pred_region
        _
      $region16: #{attention_block_forward.1} parent=11 // pred_fallthru
        _
      // Predicated region
      $region17: #{attention_block_forward.1} parent=11 // pred_check
        %p165 = pneg %p79
      $region18: #{attention_block_forward.1} parent=11 // pred_check_branch
        %167 = sbr.rel (%p165) target = $region20
      $region19: #{attention_block_forward.1} parent=11 // pred_region
        _
      $region20: #{attention_block_forward.1} parent=11 // pred_fallthru
        _
      // Predicated region
      $region21: #{attention_block_forward.1} parent=11 // pred_check
        %p168 = pneg %p100
      $region22: #{attention_block_forward.1} parent=11 // pred_check_branch
        %170 = sbr.rel (%p168) target = $region24
      $region23: #{attention_block_forward.1} parent=11 // pred_region
        _
      $region24: #{attention_block_forward.1} parent=11 // pred_fallthru
        _
      // Predicated region
      $region25: #{attention_block_forward.1} parent=11 // pred_check
        %p171 = pneg %p121
      $region26: #{attention_block_forward.1} parent=11 // pred_check_branch
        %173 = sbr.rel (%p171) target = $region28
      $region27: #{attention_block_forward.1} parent=11 // pred_region
        _
      $region28: #{attention_block_forward.1} parent=11 // pred_fallthru
        _
    $region12: #{attention_block_forward.1} parent=5 // pred_fallthru
      _
    %p174 = scmp.lt.s32.totalorder %s11, 2
    // Predicated region
    $region29: #{attention_block_forward.1} parent=5 // pred_check
      %p175 = pneg %p174
    $region30: #{attention_block_forward.1} parent=5 // pred_check_branch
      %177 = sbr.rel (%p175) target = $region32
    $region31: #{attention_block_forward.1} parent=5 // pred_region
      // Predicated region
      $region33: #{attention_block_forward.1} parent=31 // pred_check
        %p178 = pneg %p31
      $region34: #{attention_block_forward.1} parent=31 // pred_check_branch
        %180 = sbr.rel (%p178) target = $region36
      $region35: #{attention_block_forward.1} parent=31 // pred_region
        %p181 = scmp.lt.s32.totalorder %s11, 1
        %s182 = scalar_select %p181, %s11, 1
        %s183 = smul.addr %s182, 8
        %s184 = smul.addr %s183, 8
        %s185 = scalar_lea.vmem %s0, %s184
      $region36: #{attention_block_forward.1} parent=31 // pred_fallthru
        _
    $region32: #{attention_block_forward.1} parent=5 // pred_fallthru
      _
    %p186 = scmp.le.s32.totalorder 1, %s11
    %p187 = scmp.lt.s32.totalorder %s11, 3
    %p188 = pnand %p186, %p187
    %p189 = pneg %p188
    // Predicated region
    $region37: #{attention_block_forward.1} parent=5 // pred_check
      _
    $region38: #{attention_block_forward.1} parent=5 // pred_check_branch
      %191 = sbr.rel (%p188) target = $region40
    $region39: #{attention_block_forward.1} parent=5 // pred_region
      %s192 = ssub.s32 %s11, 1
      %p193 = scmp.lt.s32.totalorder %s16, 1
      %s194 = scalar_select %p193, %s16, 1
      %s195 = smul.addr %s194, 8
      %s196 = smul.addr %s195, 8
      %s197 = scalar_lea.vmem %s0, %s196
      %p198 = pneg %p37
      %p199 = pneg %p34
      %p200 = pneg %p58
      %p201 = pneg %p55
      %p202 = pneg %p79
      %p203 = pneg %p76
      %p204 = pneg %p100
      %p205 = pneg %p97
      %p206 = pneg %p121
      %p207 = pneg %p118
      %p208 = pneg %p147
      %p209 = pneg %p144
      %p210 = scmp.lt.s32.totalorder %s16, 1
      %s211 = scalar_select %p210, %s16, 1
      %s212 = smul.addr %s211, 8
      %s213 = smul.addr %s212, 8
      %s214 = scalar_lea.vmem %s5, %s213
      %p215 = scmp.lt.s32.totalorder %s16, 1
      %s216 = scalar_select %p215, %s16, 1
      %s217 = smul.addr %s216, 8
      %s218 = smul.addr %s217, 8
      %s219 = scalar_lea.vmem %s0, %s218
      %p220 = scmp.lt.s32.totalorder %s16, 1
      %s221 = scalar_select %p220, %s16, 1
      %s222 = smul.addr %s221, 8
      %s223 = smul.addr %s222, 8
      %s224 = scalar_lea.vmem %s5, %s223
      %v227 = vld [vmem:[%s219] sm:$0xff]
      %v228 = vld [vmem:[%s219 + $0x8] sm:$0xff]
      %v229 = vld [vmem:[%s219 + $0x10] sm:$0xff]
      %v230 = vld [vmem:[%s219 + $0x18] sm:$0xff]
      %v231 = vld [vmem:[%s219 + $0x20] sm:$0xff]
      %v232 = vld [vmem:[%s219 + $0x28] sm:$0xff]
      %v233 = vld [vmem:[%s219 + $0x30] sm:$0xff]
      %v234 = vld [vmem:[%s219 + $0x38] sm:$0xff]
      %v235 = vld [vmem:[%s1] sm:$0xf]
      %v236 = vld [vmem:[%s1 + $0x4] sm:$0xf]
      %v237 = vld [vmem:[%s1 + $0x8] sm:$0xf]
      %v238 = vld [vmem:[%s1 + $0xc] sm:$0xf]
      %v239 = vld [vmem:[%s1 + $0x10] sm:$0xf]
      %v240 = vld [vmem:[%s1 + $0x14] sm:$0xf]
      %v241 = vld [vmem:[%s1 + $0x18] sm:$0xf]
      %v242 = vld [vmem:[%s1 + $0x1c] sm:$0xf]
      %v243 = vld [vmem:[%s1 + $0x20] sm:$0xf]
      %v244 = vld [vmem:[%s1 + $0x24] sm:$0xf]
      %v245 = vld [vmem:[%s1 + $0x28] sm:$0xf]
      %v246 = vld [vmem:[%s1 + $0x2c] sm:$0xf]
      %v247 = vld [vmem:[%s3] sm:$0xf]
      %v248 = vld [vmem:[%s3 + $0x4] sm:$0xf]
      %v249 = vld [vmem:[%s3 + $0x8] sm:$0xf]
      %v250 = vld [vmem:[%s3 + $0xc] sm:$0xf]
      %v251 = vld [vmem:[%s2] sm:$0xff]
      %v252 = vld [vmem:[%s2 + $0x8] sm:$0xff]
      %v253 = vld [vmem:[%s2 + $0x10] sm:$0xff]
      %v254 = vld [vmem:[%s2 + $0x18] sm:$0xff]
      %v255 = vld [vmem:[%s2 + $0x20] sm:$0xff]
      %v256 = vld [vmem:[%s2 + $0x28] sm:$0xff]
      %v257 = vld [vmem:[%s2 + $0x30] sm:$0xff]
      %v258 = vld [vmem:[%s2 + $0x38] sm:$0xff]
      %v259 = vld [vmem:[%s2 + $0x40] sm:$0xff]
      %v260 = vld [vmem:[%s2 + $0x48] sm:$0xff]
      %v261 = vld [vmem:[%s2 + $0x50] sm:$0xff]
      %v262 = vld [vmem:[%s2 + $0x58] sm:$0xff]
      %v263 = vld [vmem:[%s4] sm:$0xff]
      %v264 = vld [vmem:[%s4 + $0x8] sm:$0xff]
      %v265 = vld [vmem:[%s4 + $0x10] sm:$0xff]
      %v266 = vld [vmem:[%s4 + $0x18] sm:$0xff]
      %v267 = vpack.c.bf16 %v229, %v227
      %v268 = vpack.c.bf16 %v230, %v228
      %v269 = vpack.c.bf16 %v233, %v231
      %v270 = vpack.c.bf16 %v234, %v232
      %272 = vset.pattern.permute.xlu0 0
      %273 = vperm.xlu0 %272, %v251
      %v274 = vpop.permute.xlu0 %273
      %277 = vset.pattern.permute.xlu0 0
      %278 = vperm.xlu0 %277, %v252
      %v279 = vpop.permute.xlu0 %278
      %282 = vset.pattern.permute.xlu0 0
      %283 = vperm.xlu0 %282, %v253
      %v284 = vpop.permute.xlu0 %283
      %287 = vset.pattern.permute.xlu0 0
      %288 = vperm.xlu0 %287, %v254
      %v289 = vpop.permute.xlu0 %288
      %292 = vset.pattern.permute.xlu0 0
      %293 = vperm.xlu0 %292, %v255
      %v294 = vpop.permute.xlu0 %293
      %297 = vset.pattern.permute.xlu0 0
      %298 = vperm.xlu0 %297, %v256
      %v299 = vpop.permute.xlu0 %298
      %302 = vset.pattern.permute.xlu0 0
      %303 = vperm.xlu0 %302, %v257
      %v304 = vpop.permute.xlu0 %303
      %307 = vset.pattern.permute.xlu0 0
      %308 = vperm.xlu0 %307, %v258
      %v309 = vpop.permute.xlu0 %308
      %312 = vset.pattern.permute.xlu0 0
      %313 = vperm.xlu0 %312, %v259
      %v314 = vpop.permute.xlu0 %313
      %317 = vset.pattern.permute.xlu0 0
      %318 = vperm.xlu0 %317, %v260
      %v319 = vpop.permute.xlu0 %318
      %322 = vset.pattern.permute.xlu0 0
      %323 = vperm.xlu0 %322, %v261
      %v324 = vpop.permute.xlu0 %323
      %327 = vset.pattern.permute.xlu0 0
      %328 = vperm.xlu0 %327, %v262
      %v329 = vpop.permute.xlu0 %328
      %v343 = vunpack.c.l.b16 %v235
      %v344 = vunpack.c.l.b16 %v236
      %v345 = vunpack.c.l.b16 %v237
      %v346 = vunpack.c.l.b16 %v238
      %v347 = vunpack.c.l.b16 %v239
      %v348 = vunpack.c.l.b16 %v240
      %v349 = vunpack.c.l.b16 %v241
      %v350 = vunpack.c.l.b16 %v242
      %v351 = vunpack.c.l.b16 %v243
      %v352 = vunpack.c.l.b16 %v244
      %v353 = vunpack.c.l.b16 %v245
      %v354 = vunpack.c.l.b16 %v246
      %v355 = vpack.c.b16 %v344, %v343
      %v356 = vpack.c.b16 %v346, %v345
      %v357 = vpack.c.b16 %v348, %v347
      %v358 = vpack.c.b16 %v350, %v349
      %v359 = vpack.c.b16 %v352, %v351
      %v360 = vpack.c.b16 %v354, %v353
      %vm361 = vcmask 261120
      %v363 = vsel %vm361, %v355, 0
      %v366 = vsel %vm361, %v356, 0
      %v369 = vsel %vm361, %v357, 0
      %v372 = vsel %vm361, %v358, 0
      %v375 = vsel %vm361, %v359, 0
      %v378 = vsel %vm361, %v360, 0
      %380 = vmatprep.subr.bf16.mxu0 0
      %381 = vmatpush1.bf16.msra.mxu0 0
      %382 = vmatprep.subr.bf16.mxu0 0
      %383 = vmatpush1.bf16.msra.mxu0 0
      %384 = vmatprep.subr.bf16.mxu0 0
      %385 = vmatpush1.bf16.msra.mxu0 0
      %386 = vmatprep.subr.bf16.mxu0 0
      %387 = vmatpush1.bf16.msra.mxu0 0
      %388 = vmatprep.subr.bf16.mxu0 0
      %389 = vmatpush1.bf16.msra.mxu0 0
      %390 = vmatprep.subr.bf16.mxu0 0
      %391 = vmatpush1.bf16.msra.mxu0 0
      %392 = vmatprep.subr.bf16.mxu0 %v270
      %393 = vmatpush1.bf16.msra.mxu0 %v269
      %394 = vmatprep.subr.bf16.mxu0 %v268
      %395 = vmatpush1.bf16.msra.mxu0 %v267
      %396 = vmatprep.subr.bf16.mxu0 0
      %397 = vmatpush2.bf16.msra.mxu0 0
      %398 = vmatprep.subr.bf16.mxu0 0
      %399 = vmatpush2.bf16.msra.mxu0 0
      %400 = vmatprep.subr.bf16.mxu0 0
      %401 = vmatpush2.bf16.msra.mxu0 0
      %402 = vmatprep.subr.bf16.mxu0 0
      %403 = vmatpush2.bf16.msra.mxu0 0
      %404 = vmatprep.subr.bf16.mxu0 0
      %405 = vmatpush2.bf16.msra.mxu0 0
      %406 = vmatprep.subr.bf16.mxu0 0
      %407 = vmatpush2.bf16.msra.mxu0 0
      %408 = vmatprep.subr.bf16.mxu0 0
      %409 = vmatpush2.bf16.msra.mxu0 0
      %410 = vmatprep.subr.bf16.mxu0 0
      %411 = vmatpush2.bf16.msra.mxu0 0
      %412 = vmatprep.mubr.bf16.mxu0 0
      %413 = vmatmul.mubr.bf16.gmra.mxu0 %v363
      %v414 = vpop.f32.mrf.mxu0
      %v415 = vadd.f32 %v274, %v414
      %v416 = vpop.f32.mrf.mxu0
      %v417 = vadd.f32 %v274, %v416
      %v418 = vpop.f32.mrf.mxu0
      %v419 = vadd.f32 %v279, %v418
      %v420 = vpop.f32.mrf.mxu0
      %v421 = vadd.f32 %v279, %v420
      %422 = vmatprep.mubr.bf16.mxu0 0
      %423 = vmatmul.mubr.bf16.gmra.mxu0 %v366
      %v424 = vpop.f32.mrf.mxu0
      %v425 = vadd.f32 %v284, %v424
      %v426 = vpop.f32.mrf.mxu0
      %v427 = vadd.f32 %v284, %v426
      %v428 = vpop.f32.mrf.mxu0
      %v429 = vadd.f32 %v289, %v428
      %v430 = vpop.f32.mrf.mxu0
      %v431 = vadd.f32 %v289, %v430
      %432 = vmatprep.mubr.bf16.mxu0 0
      %433 = vmatmul.mubr.bf16.gmra.mxu0 %v369
      %v434 = vpop.f32.mrf.mxu0
      %v435 = vadd.f32 %v294, %v434
      %v436 = vpop.f32.mrf.mxu0
      %v437 = vadd.f32 %v294, %v436
      %v438 = vpop.f32.mrf.mxu0
      %v439 = vadd.f32 %v299, %v438
      %v440 = vpop.f32.mrf.mxu0
      %v441 = vadd.f32 %v299, %v440
      %442 = vmatprep.mubr.bf16.mxu0 0
      %443 = vmatmul.mubr.bf16.gmra.mxu0 %v372
      %v444 = vpop.f32.mrf.mxu0
      %v445 = vadd.f32 %v304, %v444
      %v446 = vpop.f32.mrf.mxu0
      %v447 = vadd.f32 %v304, %v446
      %v448 = vpop.f32.mrf.mxu0
      %v449 = vadd.f32 %v309, %v448
      %v450 = vpop.f32.mrf.mxu0
      %v451 = vadd.f32 %v309, %v450
      %452 = vmatprep.mubr.bf16.mxu0 0
      %453 = vmatmul.mubr.bf16.gmra.mxu0 %v375
      %v454 = vpop.f32.mrf.mxu0
      %v455 = vadd.f32 %v314, %v454
      %v456 = vpop.f32.mrf.mxu0
      %v457 = vadd.f32 %v314, %v456
      %v458 = vpop.f32.mrf.mxu0
      %v459 = vadd.f32 %v319, %v458
      %v460 = vpop.f32.mrf.mxu0
      %v461 = vadd.f32 %v319, %v460
      %462 = vmatprep.mubr.bf16.mxu0 0
      %463 = vmatmul.mubr.bf16.gmra.mxu0 %v378
      %v464 = vpop.f32.mrf.mxu0
      %v465 = vadd.f32 %v324, %v464
      %v466 = vpop.f32.mrf.mxu0
      %v467 = vadd.f32 %v324, %v466
      %v468 = vpop.f32.mrf.mxu0
      %v469 = vadd.f32 %v329, %v468
      %v470 = vpop.f32.mrf.mxu0
      %v471 = vadd.f32 %v329, %v470
      %472 = vdwg.mxu0
      %v473 = vmul.f32 %v415, 0.17677669
      %v474 = vmul.f32 %v417, 0.17677669
      %v475 = vmul.f32 %v419, 0.17677669
      %v476 = vmul.f32 %v421, 0.17677669
      %v477 = vmul.f32 %v425, 0.17677669
      %v478 = vmul.f32 %v427, 0.17677669
      %v479 = vmul.f32 %v429, 0.17677669
      %v480 = vmul.f32 %v431, 0.17677669
      %v481 = vpack.c.bf16 %v475, %v473
      %v482 = vpack.c.bf16 %v476, %v474
      %v483 = vpack.c.bf16 %v479, %v477
      %v484 = vpack.c.bf16 %v480, %v478
      %v485 = vpack.c.bf16 %v439, %v435
      %v486 = vpack.c.bf16 %v441, %v437
      %v487 = vpack.c.bf16 %v449, %v445
      %v488 = vpack.c.bf16 %v451, %v447
      %489 = vxpose.xlu0.c.b16.start [1/8] %v481, 128
      %490 = vxpose.xlu0.c.b16.cont [2/8] %v483, 128
      %491 = vxpose.xlu0.c.b16.cont [3/8] 0, 128
      %492 = vxpose.xlu0.c.b16.cont [4/8] 0, 128
      %493 = vxpose.xlu0.c.b16.cont [5/8] 0, 128
      %494 = vxpose.xlu0.c.b16.cont [6/8] 0, 128
      %495 = vxpose.xlu0.c.b16.cont [7/8] 0, 128
      %496 = vxpose.xlu0.c.b16.end [8/8] 0, 128
      %v497 = vpop.trf.xlu0
      %v498 = vpop.trf.xlu0
      %v499 = vpop.trf.xlu0
      %v500 = vpop.trf.xlu0
      %v501 = vpop.trf.xlu0
      %v502 = vpop.trf.xlu0
      %v503 = vpop.trf.xlu0
      %v504 = vpop.trf.xlu0
      %505 = vxpose.xlu0.c.b16.start [1/8] %v482, 128
      %506 = vxpose.xlu0.c.b16.cont [2/8] %v484, 128
      %507 = vxpose.xlu0.c.b16.cont [3/8] 0, 128
      %508 = vxpose.xlu0.c.b16.cont [4/8] 0, 128
      %509 = vxpose.xlu0.c.b16.cont [5/8] 0, 128
      %510 = vxpose.xlu0.c.b16.cont [6/8] 0, 128
      %511 = vxpose.xlu0.c.b16.cont [7/8] 0, 128
      %512 = vxpose.xlu0.c.b16.end [8/8] 0, 128
      %v513 = vpop.trf.xlu0
      %v514 = vpop.trf.xlu0
      %v515 = vpop.trf.xlu0
      %v516 = vpop.trf.xlu0
      %v517 = vpop.trf.xlu0
      %v518 = vpop.trf.xlu0
      %v519 = vpop.trf.xlu0
      %v520 = vpop.trf.xlu0
      %v522 = vsel %vm361, %v497, 0
      %v525 = vsel %vm361, %v498, 0
      %v528 = vsel %vm361, %v499, 0
      %v531 = vsel %vm361, %v500, 0
      %v534 = vsel %vm361, %v501, 0
      %v537 = vsel %vm361, %v502, 0
      %v540 = vsel %vm361, %v503, 0
      %v543 = vsel %vm361, %v504, 0
      %v546 = vsel %vm361, %v513, 0
      %v549 = vsel %vm361, %v514, 0
      %v552 = vsel %vm361, %v515, 0
      %v555 = vsel %vm361, %v516, 0
      %v558 = vsel %vm361, %v517, 0
      %v561 = vsel %vm361, %v518, 0
      %v564 = vsel %vm361, %v519, 0
      %v567 = vsel %vm361, %v520, 0
      %569 = vmatprep.subr.bf16.mxu0 0
      %570 = vmatpush1.bf16.msra.mxu0 0
      %571 = vmatprep.subr.bf16.mxu0 0
      %572 = vmatpush1.bf16.msra.mxu0 0
      %573 = vmatprep.subr.bf16.mxu0 0
      %574 = vmatpush1.bf16.msra.mxu0 0
      %575 = vmatprep.subr.bf16.mxu0 0
      %576 = vmatpush1.bf16.msra.mxu0 0
      %577 = vmatprep.subr.bf16.mxu0 0
      %578 = vmatpush1.bf16.msra.mxu0 0
      %579 = vmatprep.subr.bf16.mxu0 0
      %580 = vmatpush1.bf16.msra.mxu0 0
      %581 = vmatprep.subr.bf16.mxu0 %v488
      %582 = vmatpush1.bf16.msra.mxu0 %v487
      %583 = vmatprep.subr.bf16.mxu0 %v486
      %584 = vmatpush1.bf16.msra.mxu0 %v485
      %585 = vmatprep.subr.bf16.mxu0 0
      %586 = vmatpush2.bf16.msra.mxu0 0
      %587 = vmatprep.subr.bf16.mxu0 0
      %588 = vmatpush2.bf16.msra.mxu0 0
      %589 = vmatprep.subr.bf16.mxu0 0
      %590 = vmatpush2.bf16.msra.mxu0 0
      %591 = vmatprep.subr.bf16.mxu0 0
      %592 = vmatpush2.bf16.msra.mxu0 0
      %593 = vmatprep.subr.bf16.mxu0 0
      %594 = vmatpush2.bf16.msra.mxu0 0
      %595 = vmatprep.subr.bf16.mxu0 0
      %596 = vmatpush2.bf16.msra.mxu0 0
      %597 = vmatprep.subr.bf16.mxu0 0
      %598 = vmatpush2.bf16.msra.mxu0 0
      %599 = vmatprep.subr.bf16.mxu0 0
      %600 = vmatpush2.bf16.msra.mxu0 0
      %601 = vmatprep.mubr.bf16.mxu0 0
      %602 = vmatmul.mubr.bf16.gmra.mxu0 %v522
      %v603 = vpop.f32.mrf.mxu0
      %v604 = vadd.f32 0.0, %v603
      %v605 = vpop.f32.mrf.mxu0
      %v606 = vadd.f32 0.0, %v605
      %v607 = vpop.f32.mrf.mxu0
      %v608 = vadd.f32 0.0, %v607
      %v609 = vpop.f32.mrf.mxu0
      %v610 = vadd.f32 0.0, %v609
      %611 = vmatprep.mubr.bf16.mxu0 0
      %612 = vmatmul.mubr.bf16.gmra.mxu0 %v525
      %v613 = vpop.f32.mrf.mxu0
      %v614 = vadd.f32 0.0, %v613
      %v615 = vpop.f32.mrf.mxu0
      %v616 = vadd.f32 0.0, %v615
      %v617 = vpop.f32.mrf.mxu0
      %v618 = vadd.f32 0.0, %v617
      %v619 = vpop.f32.mrf.mxu0
      %v620 = vadd.f32 0.0, %v619
      %621 = vmatprep.mubr.bf16.mxu0 0
      %622 = vmatmul.mubr.bf16.gmra.mxu0 %v528
      %v623 = vpop.f32.mrf.mxu0
      %v624 = vadd.f32 0.0, %v623
      %v625 = vpop.f32.mrf.mxu0
      %v626 = vadd.f32 0.0, %v625
      %v627 = vpop.f32.mrf.mxu0
      %v628 = vadd.f32 0.0, %v627
      %v629 = vpop.f32.mrf.mxu0
      %v630 = vadd.f32 0.0, %v629
      %631 = vmatprep.mubr.bf16.mxu0 0
      %632 = vmatmul.mubr.bf16.gmra.mxu0 %v531
      %v633 = vpop.f32.mrf.mxu0
      %v634 = vadd.f32 0.0, %v633
      %v635 = vpop.f32.mrf.mxu0
      %v636 = vadd.f32 0.0, %v635
      %v637 = vpop.f32.mrf.mxu0
      %v638 = vadd.f32 0.0, %v637
      %v639 = vpop.f32.mrf.mxu0
      %v640 = vadd.f32 0.0, %v639
      %641 = vmatprep.mubr.bf16.mxu0 0
      %642 = vmatmul.mubr.bf16.gmra.mxu0 %v534
      %v643 = vpop.f32.mrf.mxu0
      %v644 = vadd.f32 0.0, %v643
      %v645 = vpop.f32.mrf.mxu0
      %v646 = vadd.f32 0.0, %v645
      %v647 = vpop.f32.mrf.mxu0
      %v648 = vadd.f32 0.0, %v647
      %v649 = vpop.f32.mrf.mxu0
      %v650 = vadd.f32 0.0, %v649
      %651 = vmatprep.mubr.bf16.mxu0 0
      %652 = vmatmul.mubr.bf16.gmra.mxu0 %v537
      %v653 = vpop.f32.mrf.mxu0
      %v654 = vadd.f32 0.0, %v653
      %v655 = vpop.f32.mrf.mxu0
      %v656 = vadd.f32 0.0, %v655
      %v657 = vpop.f32.mrf.mxu0
      %v658 = vadd.f32 0.0, %v657
      %v659 = vpop.f32.mrf.mxu0
      %v660 = vadd.f32 0.0, %v659
      %661 = vmatprep.mubr.bf16.mxu0 0
      %662 = vmatmul.mubr.bf16.gmra.mxu0 %v540
      %v663 = vpop.f32.mrf.mxu0
      %v664 = vadd.f32 0.0, %v663
      %v665 = vpop.f32.mrf.mxu0
      %v666 = vadd.f32 0.0, %v665
      %v667 = vpop.f32.mrf.mxu0
      %v668 = vadd.f32 0.0, %v667
      %v669 = vpop.f32.mrf.mxu0
      %v670 = vadd.f32 0.0, %v669
      %671 = vmatprep.mubr.bf16.mxu0 0
      %672 = vmatmul.mubr.bf16.gmra.mxu0 %v543
      %v673 = vpop.f32.mrf.mxu0
      %v674 = vadd.f32 0.0, %v673
      %v675 = vpop.f32.mrf.mxu0
      %v676 = vadd.f32 0.0, %v675
      %v677 = vpop.f32.mrf.mxu0
      %v678 = vadd.f32 0.0, %v677
      %v679 = vpop.f32.mrf.mxu0
      %v680 = vadd.f32 0.0, %v679
      %681 = vmatprep.mubr.bf16.mxu0 0
      %682 = vmatmul.mubr.bf16.gmra.mxu0 %v546
      %v683 = vpop.f32.mrf.mxu0
      %v684 = vadd.f32 0.0, %v683
      %v685 = vpop.f32.mrf.mxu0
      %v686 = vadd.f32 0.0, %v685
      %v687 = vpop.f32.mrf.mxu0
      %v688 = vadd.f32 0.0, %v687
      %v689 = vpop.f32.mrf.mxu0
      %v690 = vadd.f32 0.0, %v689
      %691 = vmatprep.mubr.bf16.mxu0 0
      %692 = vmatmul.mubr.bf16.gmra.mxu0 %v549
      %v693 = vpop.f32.mrf.mxu0
      %v694 = vadd.f32 0.0, %v693
      %v695 = vpop.f32.mrf.mxu0
      %v696 = vadd.f32 0.0, %v695
      %v697 = vpop.f32.mrf.mxu0
      %v698 = vadd.f32 0.0, %v697
      %v699 = vpop.f32.mrf.mxu0
      %v700 = vadd.f32 0.0, %v699
      %701 = vmatprep.mubr.bf16.mxu0 0
      %702 = vmatmul.mubr.bf16.gmra.mxu0 %v552
      %v703 = vpop.f32.mrf.mxu0
      %v704 = vadd.f32 0.0, %v703
      %v705 = vpop.f32.mrf.mxu0
      %v706 = vadd.f32 0.0, %v705
      %v707 = vpop.f32.mrf.mxu0
      %v708 = vadd.f32 0.0, %v707
      %v709 = vpop.f32.mrf.mxu0
      %v710 = vadd.f32 0.0, %v709
      %711 = vmatprep.mubr.bf16.mxu0 0
      %712 = vmatmul.mubr.bf16.gmra.mxu0 %v555
      %v713 = vpop.f32.mrf.mxu0
      %v714 = vadd.f32 0.0, %v713
      %v715 = vpop.f32.mrf.mxu0
      %v716 = vadd.f32 0.0, %v715
      %v717 = vpop.f32.mrf.mxu0
      %v718 = vadd.f32 0.0, %v717
      %v719 = vpop.f32.mrf.mxu0
      %v720 = vadd.f32 0.0, %v719
      %721 = vmatprep.mubr.bf16.mxu0 0
      %722 = vmatmul.mubr.bf16.gmra.mxu0 %v558
      %v723 = vpop.f32.mrf.mxu0
      %v724 = vadd.f32 0.0, %v723
      %v725 = vpop.f32.mrf.mxu0
      %v726 = vadd.f32 0.0, %v725
      %v727 = vpop.f32.mrf.mxu0
      %v728 = vadd.f32 0.0, %v727
      %v729 = vpop.f32.mrf.mxu0
      %v730 = vadd.f32 0.0, %v729
      %731 = vmatprep.mubr.bf16.mxu0 0
      %732 = vmatmul.mubr.bf16.gmra.mxu0 %v561
      %v733 = vpop.f32.mrf.mxu0
      %v734 = vadd.f32 0.0, %v733
      %v735 = vpop.f32.mrf.mxu0
      %v736 = vadd.f32 0.0, %v735
      %v737 = vpop.f32.mrf.mxu0
      %v738 = vadd.f32 0.0, %v737
      %v739 = vpop.f32.mrf.mxu0
      %v740 = vadd.f32 0.0, %v739
      %741 = vmatprep.mubr.bf16.mxu0 0
      %742 = vmatmul.mubr.bf16.gmra.mxu0 %v564
      %v743 = vpop.f32.mrf.mxu0
      %v744 = vadd.f32 0.0, %v743
      %v745 = vpop.f32.mrf.mxu0
      %v746 = vadd.f32 0.0, %v745
      %v747 = vpop.f32.mrf.mxu0
      %v748 = vadd.f32 0.0, %v747
      %v749 = vpop.f32.mrf.mxu0
      %v750 = vadd.f32 0.0, %v749
      %751 = vmatprep.mubr.bf16.mxu0 0
      %752 = vmatmul.mubr.bf16.gmra.mxu0 %v567
      %v753 = vpop.f32.mrf.mxu0
      %v754 = vadd.f32 0.0, %v753
      %v755 = vpop.f32.mrf.mxu0
      %v756 = vadd.f32 0.0, %v755
      %v757 = vpop.f32.mrf.mxu0
      %v758 = vadd.f32 0.0, %v757
      %v759 = vpop.f32.mrf.mxu0
      %v760 = vadd.f32 0.0, %v759
      %761 = vdwg.mxu0
      %v762 = vmax.f32 %v604, %v606
      %763 = vmax.xlane.f32.xlu0 %v762
      %v764 = vpop.xlane.xlu0 %763
      %v765 = vmax.f32 %v608, %v610
      %766 = vmax.xlane.f32.xlu0 %v765
      %v767 = vpop.xlane.xlu0 %766
      %v768 = vmax.f32 %v614, %v616
      %769 = vmax.xlane.f32.xlu0 %v768
      %v770 = vpop.xlane.xlu0 %769
      %v771 = vmax.f32 %v618, %v620
      %772 = vmax.xlane.f32.xlu0 %v771
      %v773 = vpop.xlane.xlu0 %772
      %v774 = vmax.f32 %v624, %v626
      %775 = vmax.xlane.f32.xlu0 %v774
      %v776 = vpop.xlane.xlu0 %775
      %v777 = vmax.f32 %v628, %v630
      %778 = vmax.xlane.f32.xlu0 %v777
      %v779 = vpop.xlane.xlu0 %778
      %v780 = vmax.f32 %v634, %v636
      %781 = vmax.xlane.f32.xlu0 %v780
      %v782 = vpop.xlane.xlu0 %781
      %v783 = vmax.f32 %v638, %v640
      %784 = vmax.xlane.f32.xlu0 %v783
      %v785 = vpop.xlane.xlu0 %784
      %v786 = vmax.f32 %v644, %v646
      %787 = vmax.xlane.f32.xlu0 %v786
      %v788 = vpop.xlane.xlu0 %787
      %v789 = vmax.f32 %v648, %v650
      %790 = vmax.xlane.f32.xlu0 %v789
      %v791 = vpop.xlane.xlu0 %790
      %v792 = vmax.f32 %v654, %v656
      %793 = vmax.xlane.f32.xlu0 %v792
      %v794 = vpop.xlane.xlu0 %793
      %v795 = vmax.f32 %v658, %v660
      %796 = vmax.xlane.f32.xlu0 %v795
      %v797 = vpop.xlane.xlu0 %796
      %v798 = vmax.f32 %v664, %v666
      %799 = vmax.xlane.f32.xlu0 %v798
      %v800 = vpop.xlane.xlu0 %799
      %v801 = vmax.f32 %v668, %v670
      %802 = vmax.xlane.f32.xlu0 %v801
      %v803 = vpop.xlane.xlu0 %802
      %v804 = vmax.f32 %v674, %v676
      %805 = vmax.xlane.f32.xlu0 %v804
      %v806 = vpop.xlane.xlu0 %805
      %v807 = vmax.f32 %v678, %v680
      %808 = vmax.xlane.f32.xlu0 %v807
      %v809 = vpop.xlane.xlu0 %808
      %v810 = vmax.f32 %v684, %v686
      %811 = vmax.xlane.f32.xlu0 %v810
      %v812 = vpop.xlane.xlu0 %811
      %v813 = vmax.f32 %v688, %v690
      %814 = vmax.xlane.f32.xlu0 %v813
      %v815 = vpop.xlane.xlu0 %814
      %v816 = vmax.f32 %v694, %v696
      %817 = vmax.xlane.f32.xlu0 %v816
      %v818 = vpop.xlane.xlu0 %817
      %v819 = vmax.f32 %v698, %v700
      %820 = vmax.xlane.f32.xlu0 %v819
      %v821 = vpop.xlane.xlu0 %820
      %v822 = vmax.f32 %v704, %v706
      %823 = vmax.xlane.f32.xlu0 %v822
      %v824 = vpop.xlane.xlu0 %823
      %v825 = vmax.f32 %v708, %v710
      %826 = vmax.xlane.f32.xlu0 %v825
      %v827 = vpop.xlane.xlu0 %826
      %v828 = vmax.f32 %v714, %v716
      %829 = vmax.xlane.f32.xlu0 %v828
      %v830 = vpop.xlane.xlu0 %829
      %v831 = vmax.f32 %v718, %v720
      %832 = vmax.xlane.f32.xlu0 %v831
      %v833 = vpop.xlane.xlu0 %832
      %v834 = vmax.f32 %v724, %v726
      %835 = vmax.xlane.f32.xlu0 %v834
      %v836 = vpop.xlane.xlu0 %835
      %v837 = vmax.f32 %v728, %v730
      %838 = vmax.xlane.f32.xlu0 %v837
      %v839 = vpop.xlane.xlu0 %838
      %v840 = vmax.f32 %v734, %v736
      %841 = vmax.xlane.f32.xlu0 %v840
      %v842 = vpop.xlane.xlu0 %841
      %v843 = vmax.f32 %v738, %v740
      %844 = vmax.xlane.f32.xlu0 %v843
      %v845 = vpop.xlane.xlu0 %844
      %v846 = vmax.f32 %v744, %v746
      %847 = vmax.xlane.f32.xlu0 %v846
      %v848 = vpop.xlane.xlu0 %847
      %v849 = vmax.f32 %v748, %v750
      %850 = vmax.xlane.f32.xlu0 %v849
      %v851 = vpop.xlane.xlu0 %850
      %v852 = vmax.f32 %v754, %v756
      %853 = vmax.xlane.f32.xlu0 %v852
      %v854 = vpop.xlane.xlu0 %853
      %v855 = vmax.f32 %v758, %v760
      %856 = vmax.xlane.f32.xlu0 %v855
      %v857 = vpop.xlane.xlu0 %856
      %v858 = vsub.f32 %v604, %v764
      %v859 = vsub.f32 %v606, %v764
      %v860 = vsub.f32 %v608, %v767
      %v861 = vsub.f32 %v610, %v767
      %v862 = vsub.f32 %v614, %v770
      %v863 = vsub.f32 %v616, %v770
      %v864 = vsub.f32 %v618, %v773
      %v865 = vsub.f32 %v620, %v773
      %v866 = vsub.f32 %v624, %v776
      %v867 = vsub.f32 %v626, %v776
      %v868 = vsub.f32 %v628, %v779
      %v869 = vsub.f32 %v630, %v779
      %v870 = vsub.f32 %v634, %v782
      %v871 = vsub.f32 %v636, %v782
      %v872 = vsub.f32 %v638, %v785
      %v873 = vsub.f32 %v640, %v785
      %v874 = vsub.f32 %v644, %v788
      %v875 = vsub.f32 %v646, %v788
      %v876 = vsub.f32 %v648, %v791
      %v877 = vsub.f32 %v650, %v791
      %v878 = vsub.f32 %v654, %v794
      %v879 = vsub.f32 %v656, %v794
      %v880 = vsub.f32 %v658, %v797
      %v881 = vsub.f32 %v660, %v797
      %v882 = vsub.f32 %v664, %v800
      %v883 = vsub.f32 %v666, %v800
      %v884 = vsub.f32 %v668, %v803
      %v885 = vsub.f32 %v670, %v803
      %v886 = vsub.f32 %v674, %v806
      %v887 = vsub.f32 %v676, %v806
      %v888 = vsub.f32 %v678, %v809
      %v889 = vsub.f32 %v680, %v809
      %v890 = vsub.f32 %v684, %v812
      %v891 = vsub.f32 %v686, %v812
      %v892 = vsub.f32 %v688, %v815
      %v893 = vsub.f32 %v690, %v815
      %v894 = vsub.f32 %v694, %v818
      %v895 = vsub.f32 %v696, %v818
      %v896 = vsub.f32 %v698, %v821
      %v897 = vsub.f32 %v700, %v821
      %v898 = vsub.f32 %v704, %v824
      %v899 = vsub.f32 %v706, %v824
      %v900 = vsub.f32 %v708, %v827
      %v901 = vsub.f32 %v710, %v827
      %v902 = vsub.f32 %v714, %v830
      %v903 = vsub.f32 %v716, %v830
      %v904 = vsub.f32 %v718, %v833
      %v905 = vsub.f32 %v720, %v833
      %v906 = vsub.f32 %v724, %v836
      %v907 = vsub.f32 %v726, %v836
      %v908 = vsub.f32 %v728, %v839
      %v909 = vsub.f32 %v730, %v839
      %v910 = vsub.f32 %v734, %v842
      %v911 = vsub.f32 %v736, %v842
      %v912 = vsub.f32 %v738, %v845
      %v913 = vsub.f32 %v740, %v845
      %v914 = vsub.f32 %v744, %v848
      %v915 = vsub.f32 %v746, %v848
      %v916 = vsub.f32 %v748, %v851
      %v917 = vsub.f32 %v750, %v851
      %v918 = vsub.f32 %v754, %v854
      %v919 = vsub.f32 %v756, %v854
      %v920 = vsub.f32 %v758, %v857
      %v921 = vsub.f32 %v760, %v857
      %v922 = vmul.f32 %v858, 1.442695
      %v923 = vpow.pop %v922
      %v924 = vmul.f32 %v859, 1.442695
      %v925 = vpow.pop %v924
      %v926 = vmul.f32 %v860, 1.442695
      %v927 = vpow.pop %v926
      %v928 = vmul.f32 %v861, 1.442695
      %v929 = vpow.pop %v928
      %v930 = vmul.f32 %v862, 1.442695
      %v931 = vpow.pop %v930
      %v932 = vmul.f32 %v863, 1.442695
      %v933 = vpow.pop %v932
      %v934 = vmul.f32 %v864, 1.442695
      %v935 = vpow.pop %v934
      %v936 = vmul.f32 %v865, 1.442695
      %v937 = vpow.pop %v936
      %v938 = vmul.f32 %v866, 1.442695
      %v939 = vpow.pop %v938
      %v940 = vmul.f32 %v867, 1.442695
      %v941 = vpow.pop %v940
      %v942 = vmul.f32 %v868, 1.442695
      %v943 = vpow.pop %v942
      %v944 = vmul.f32 %v869, 1.442695
      %v945 = vpow.pop %v944
      %v946 = vmul.f32 %v870, 1.442695
      %v947 = vpow.pop %v946
      %v948 = vmul.f32 %v871, 1.442695
      %v949 = vpow.pop %v948
      %v950 = vmul.f32 %v872, 1.442695
      %v951 = vpow.pop %v950
      %v952 = vmul.f32 %v873, 1.442695
      %v953 = vpow.pop %v952
      %v954 = vmul.f32 %v874, 1.442695
      %v955 = vpow.pop %v954
      %v956 = vmul.f32 %v875, 1.442695
      %v957 = vpow.pop %v956
      %v958 = vmul.f32 %v876, 1.442695
      %v959 = vpow.pop %v958
      %v960 = vmul.f32 %v877, 1.442695
      %v961 = vpow.pop %v960
      %v962 = vmul.f32 %v878, 1.442695
      %v963 = vpow.pop %v962
      %v964 = vmul.f32 %v879, 1.442695
      %v965 = vpow.pop %v964
      %v966 = vmul.f32 %v880, 1.442695
      %v967 = vpow.pop %v966
      %v968 = vmul.f32 %v881, 1.442695
      %v969 = vpow.pop %v968
      %v970 = vmul.f32 %v882, 1.442695
      %v971 = vpow.pop %v970
      %v972 = vmul.f32 %v883, 1.442695
      %v973 = vpow.pop %v972
      %v974 = vmul.f32 %v884, 1.442695
      %v975 = vpow.pop %v974
      %v976 = vmul.f32 %v885, 1.442695
      %v977 = vpow.pop %v976
      %v978 = vmul.f32 %v886, 1.442695
      %v979 = vpow.pop %v978
      %v980 = vmul.f32 %v887, 1.442695
      %v981 = vpow.pop %v980
      %v982 = vmul.f32 %v888, 1.442695
      %v983 = vpow.pop %v982
      %v984 = vmul.f32 %v889, 1.442695
      %v985 = vpow.pop %v984
      %v986 = vmul.f32 %v890, 1.442695
      %v987 = vpow.pop %v986
      %v988 = vmul.f32 %v891, 1.442695
      %v989 = vpow.pop %v988
      %v990 = vmul.f32 %v892, 1.442695
      %v991 = vpow.pop %v990
      %v992 = vmul.f32 %v893, 1.442695
      %v993 = vpow.pop %v992
      %v994 = vmul.f32 %v894, 1.442695
      %v995 = vpow.pop %v994
      %v996 = vmul.f32 %v895, 1.442695
      %v997 = vpow.pop %v996
      %v998 = vmul.f32 %v896, 1.442695
      %v999 = vpow.pop %v998
      %v1000 = vmul.f32 %v897, 1.442695
      %v1001 = vpow.pop %v1000
      %v1002 = vmul.f32 %v898, 1.442695
      %v1003 = vpow.pop %v1002
      %v1004 = vmul.f32 %v899, 1.442695
      %v1005 = vpow.pop %v1004
      %v1006 = vmul.f32 %v900, 1.442695
      %v1007 = vpow.pop %v1006
      %v1008 = vmul.f32 %v901, 1.442695
      %v1009 = vpow.pop %v1008
      %v1010 = vmul.f32 %v902, 1.442695
      %v1011 = vpow.pop %v1010
      %v1012 = vmul.f32 %v903, 1.442695
      %v1013 = vpow.pop %v1012
      %v1014 = vmul.f32 %v904, 1.442695
      %v1015 = vpow.pop %v1014
      %v1016 = vmul.f32 %v905, 1.442695
      %v1017 = vpow.pop %v1016
      %v1018 = vmul.f32 %v906, 1.442695
      %v1019 = vpow.pop %v1018
      %v1020 = vmul.f32 %v907, 1.442695
      %v1021 = vpow.pop %v1020
      %v1022 = vmul.f32 %v908, 1.442695
      %v1023 = vpow.pop %v1022
      %v1024 = vmul.f32 %v909, 1.442695
      %v1025 = vpow.pop %v1024
      %v1026 = vmul.f32 %v910, 1.442695
      %v1027 = vpow.pop %v1026
      %v1028 = vmul.f32 %v911, 1.442695
      %v1029 = vpow.pop %v1028
      %v1030 = vmul.f32 %v912, 1.442695
      %v1031 = vpow.pop %v1030
      %v1032 = vmul.f32 %v913, 1.442695
      %v1033 = vpow.pop %v1032
      %v1034 = vmul.f32 %v914, 1.442695
      %v1035 = vpow.pop %v1034
      %v1036 = vmul.f32 %v915, 1.442695
      %v1037 = vpow.pop %v1036
      %v1038 = vmul.f32 %v916, 1.442695
      %v1039 = vpow.pop %v1038
      %v1040 = vmul.f32 %v917, 1.442695
      %v1041 = vpow.pop %v1040
      %v1042 = vmul.f32 %v918, 1.442695
      %v1043 = vpow.pop %v1042
      %v1044 = vmul.f32 %v919, 1.442695
      %v1045 = vpow.pop %v1044
      %v1046 = vmul.f32 %v920, 1.442695
      %v1047 = vpow.pop %v1046
      %v1048 = vmul.f32 %v921, 1.442695
      %v1049 = vpow.pop %v1048
      %v1050 = vpack.c.bf16 %v927, %v923
      %v1051 = vpack.c.bf16 %v929, %v925
      %v1052 = vpack.c.bf16 %v935, %v931
      %v1053 = vpack.c.bf16 %v937, %v933
      %v1054 = vpack.c.bf16 %v943, %v939
      %v1055 = vpack.c.bf16 %v945, %v941
      %v1056 = vpack.c.bf16 %v951, %v947
      %v1057 = vpack.c.bf16 %v953, %v949
      %v1058 = vpack.c.bf16 %v959, %v955
      %v1059 = vpack.c.bf16 %v961, %v957
      %v1060 = vpack.c.bf16 %v967, %v963
      %v1061 = vpack.c.bf16 %v969, %v965
      %v1062 = vpack.c.bf16 %v975, %v971
      %v1063 = vpack.c.bf16 %v977, %v973
      %v1064 = vpack.c.bf16 %v983, %v979
      %v1065 = vpack.c.bf16 %v985, %v981
      %v1066 = vpack.c.bf16 %v991, %v987
      %v1067 = vpack.c.bf16 %v993, %v989
      %v1068 = vpack.c.bf16 %v999, %v995
      %v1069 = vpack.c.bf16 %v1001, %v997
      %v1070 = vpack.c.bf16 %v1007, %v1003
      %v1071 = vpack.c.bf16 %v1009, %v1005
      %v1072 = vpack.c.bf16 %v1015, %v1011
      %v1073 = vpack.c.bf16 %v1017, %v1013
      %v1074 = vpack.c.bf16 %v1023, %v1019
      %v1075 = vpack.c.bf16 %v1025, %v1021
      %v1076 = vpack.c.bf16 %v1031, %v1027
      %v1077 = vpack.c.bf16 %v1033, %v1029
      %v1078 = vpack.c.bf16 %v1039, %v1035
      %v1079 = vpack.c.bf16 %v1041, %v1037
      %v1080 = vpack.c.bf16 %v1047, %v1043
      %v1081 = vpack.c.bf16 %v1049, %v1045
      %v1082 = vpack.c.bf16 %v459, %v455
      %v1083 = vpack.c.bf16 %v461, %v457
      %v1084 = vpack.c.bf16 %v469, %v465
      %v1085 = vpack.c.bf16 %v471, %v467
      %1086 = vmatprep.subr.bf16.mxu0 %v1065
      %1087 = vmatpush1.bf16.xpose.msra.mxu0 %v1064
      %1088 = vmatprep.subr.bf16.mxu0 %v1063
      %1089 = vmatpush1.bf16.xpose.msra.mxu0 %v1062
      %1090 = vmatprep.subr.bf16.mxu0 %v1061
      %1091 = vmatpush1.bf16.xpose.msra.mxu0 %v1060
      %1092 = vmatprep.subr.bf16.mxu0 %v1059
      %1093 = vmatpush1.bf16.xpose.msra.mxu0 %v1058
      %1094 = vmatprep.subr.bf16.mxu0 %v1057
      %1095 = vmatpush1.bf16.xpose.msra.mxu0 %v1056
      %1096 = vmatprep.subr.bf16.mxu0 %v1055
      %1097 = vmatpush1.bf16.xpose.msra.mxu0 %v1054
      %1098 = vmatprep.subr.bf16.mxu0 %v1053
      %1099 = vmatpush1.bf16.xpose.msra.mxu0 %v1052
      %1100 = vmatprep.subr.bf16.mxu0 %v1051
      %1101 = vmatpush1.bf16.xpose.msra.mxu0 %v1050
      %1102 = vmatprep.subr.bf16.mxu0 %v1081
      %1103 = vmatpush2.bf16.xpose.msra.mxu0 %v1080
      %1104 = vmatprep.subr.bf16.mxu0 %v1079
      %1105 = vmatpush2.bf16.xpose.msra.mxu0 %v1078
      %1106 = vmatprep.subr.bf16.mxu0 %v1077
      %1107 = vmatpush2.bf16.xpose.msra.mxu0 %v1076
      %1108 = vmatprep.subr.bf16.mxu0 %v1075
      %1109 = vmatpush2.bf16.xpose.msra.mxu0 %v1074
      %1110 = vmatprep.subr.bf16.mxu0 %v1073
      %1111 = vmatpush2.bf16.xpose.msra.mxu0 %v1072
      %1112 = vmatprep.subr.bf16.mxu0 %v1071
      %1113 = vmatpush2.bf16.xpose.msra.mxu0 %v1070
      %1114 = vmatprep.subr.bf16.mxu0 %v1069
      %1115 = vmatpush2.bf16.xpose.msra.mxu0 %v1068
      %1116 = vmatprep.subr.bf16.mxu0 %v1067
      %1117 = vmatpush2.bf16.xpose.msra.mxu0 %v1066
      %1118 = vmatprep.mubr.bf16.mxu0 %v1083
      %1119 = vmatmul.mubr.bf16.gmra.mxu0 %v1082
      %v1120 = vpop.f32.mrf.mxu0
      %v1121 = vadd.f32 0.0, %v1120
      %v1122 = vpop.f32.mrf.mxu0
      %v1123 = vadd.f32 0.0, %v1122
      %v1124 = vpop.f32.mrf.mxu0
      %v1125 = vadd.f32 0.0, %v1124
      %v1126 = vpop.f32.mrf.mxu0
      %v1127 = vadd.f32 0.0, %v1126
      %1128 = vmatprep.mubr.bf16.mxu0 %v1085
      %1129 = vmatmul.mubr.bf16.gmra.mxu0 %v1084
      %v1130 = vpop.f32.mrf.mxu0
      %v1131 = vadd.f32 0.0, %v1130
      %v1132 = vpop.f32.mrf.mxu0
      %v1133 = vadd.f32 0.0, %v1132
      %v1134 = vpop.f32.mrf.mxu0
      %v1135 = vadd.f32 0.0, %v1134
      %v1136 = vpop.f32.mrf.mxu0
      %v1137 = vadd.f32 0.0, %v1136
      %1138 = vdwg.mxu0
      %1139 = vmatprep.subr.bf16.mxu0 %v1065
      %1140 = vmatpush1.bf16.xpose.msra.mxu0 %v1064
      %1141 = vmatprep.subr.bf16.mxu0 %v1063
      %1142 = vmatpush1.bf16.xpose.msra.mxu0 %v1062
      %1143 = vmatprep.subr.bf16.mxu0 %v1061
      %1144 = vmatpush1.bf16.xpose.msra.mxu0 %v1060
      %1145 = vmatprep.subr.bf16.mxu0 %v1059
      %1146 = vmatpush1.bf16.xpose.msra.mxu0 %v1058
      %1147 = vmatprep.subr.bf16.mxu0 %v1057
      %1148 = vmatpush1.bf16.xpose.msra.mxu0 %v1056
      %1149 = vmatprep.subr.bf16.mxu0 %v1055
      %1150 = vmatpush1.bf16.xpose.msra.mxu0 %v1054
      %1151 = vmatprep.subr.bf16.mxu0 %v1053
      %1152 = vmatpush1.bf16.xpose.msra.mxu0 %v1052
      %1153 = vmatprep.subr.bf16.mxu0 %v1051
      %1154 = vmatpush1.bf16.xpose.msra.mxu0 %v1050
      %1155 = vmatprep.subr.bf16.mxu0 %v1081
      %1156 = vmatpush2.bf16.xpose.msra.mxu0 %v1080
      %1157 = vmatprep.subr.bf16.mxu0 %v1079
      %1158 = vmatpush2.bf16.xpose.msra.mxu0 %v1078
      %1159 = vmatprep.subr.bf16.mxu0 %v1077
      %1160 = vmatpush2.bf16.xpose.msra.mxu0 %v1076
      %1161 = vmatprep.subr.bf16.mxu0 %v1075
      %1162 = vmatpush2.bf16.xpose.msra.mxu0 %v1074
      %1163 = vmatprep.subr.bf16.mxu0 %v1073
      %1164 = vmatpush2.bf16.xpose.msra.mxu0 %v1072
      %1165 = vmatprep.subr.bf16.mxu0 %v1071
      %1166 = vmatpush2.bf16.xpose.msra.mxu0 %v1070
      %1167 = vmatprep.subr.bf16.mxu0 %v1069
      %1168 = vmatpush2.bf16.xpose.msra.mxu0 %v1068
      %1169 = vmatprep.subr.bf16.mxu0 %v1067
      %1170 = vmatpush2.bf16.xpose.msra.mxu0 %v1066
      %1171 = vmatprep.mubr.bf16.mxu0 1065369472
      %1172 = vmatmul.mubr.bf16.gmra.mxu0 1065369472
      %v1173 = vpop.f32.mrf.mxu0
      %v1174 = vadd.f32 0.0, %v1173
      %v1175 = vpop.f32.mrf.mxu0
      %v1176 = vadd.f32 0.0, %v1175
      %v1177 = vpop.f32.mrf.mxu0
      %v1178 = vpop.f32.mrf.mxu0
      %1179 = vdwg.mxu0
      %v1180 = vrcp.pop %v1174
      %v1181 = vrcp.pop %v1176
      %v1182 = vlaneseq
      %v1183 = vshrl.u32 %v1182, 7
      %v1184 = vsub.s32 0, %v1183
      %v1185 = vrot.slane %v1180, %v1184
      %v1186 = vlaneseq
      %v1187 = vshrl.u32 %v1186, 7
      %v1188 = vsub.s32 0, %v1187
      %v1189 = vrot.slane %v1181, %v1188
      %v1190 = vmul.f32 %v1121, %v1185
      %v1191 = vmul.f32 %v1123, %v1189
      %v1192 = vmul.f32 %v1125, %v1185
      %v1193 = vmul.f32 %v1127, %v1189
      %v1194 = vmul.f32 %v1131, %v1185
      %v1195 = vmul.f32 %v1133, %v1189
      %v1196 = vmul.f32 %v1135, %v1185
      %v1197 = vmul.f32 %v1137, %v1189
      %v1198 = vpack.c.bf16 %v1192, %v1190
      %v1199 = vpack.c.bf16 %v1193, %v1191
      %v1200 = vpack.c.bf16 %v1196, %v1194
      %v1201 = vpack.c.bf16 %v1197, %v1195
      %1203 = vset.pattern.permute.xlu0 0
      %1204 = vperm.xlu0 %1203, %v263
      %v1205 = vpop.permute.xlu0 %1204
      %1208 = vset.pattern.permute.xlu0 0
      %1209 = vperm.xlu0 %1208, %v264
      %v1210 = vpop.permute.xlu0 %1209
      %1213 = vset.pattern.permute.xlu0 0
      %1214 = vperm.xlu0 %1213, %v265
      %v1215 = vpop.permute.xlu0 %1214
      %1218 = vset.pattern.permute.xlu0 0
      %1219 = vperm.xlu0 %1218, %v266
      %v1220 = vpop.permute.xlu0 %1219
      %v1226 = vunpack.c.l.b16 %v247
      %v1227 = vunpack.c.l.b16 %v248
      %v1228 = vunpack.c.l.b16 %v249
      %v1229 = vunpack.c.l.b16 %v250
      %v1230 = vpack.c.b16 %v1227, %v1226
      %v1231 = vpack.c.b16 %v1229, %v1228
      %v1233 = vsel %vm361, %v1230, 0
      %v1236 = vsel %vm361, %v1231, 0
      %1238 = vmatprep.subr.bf16.mxu0 0
      %1239 = vmatpush1.bf16.msra.mxu0 0
      %1240 = vmatprep.subr.bf16.mxu0 0
      %1241 = vmatpush1.bf16.msra.mxu0 0
      %1242 = vmatprep.subr.bf16.mxu0 0
      %1243 = vmatpush1.bf16.msra.mxu0 0
      %1244 = vmatprep.subr.bf16.mxu0 0
      %1245 = vmatpush1.bf16.msra.mxu0 0
      %1246 = vmatprep.subr.bf16.mxu0 0
      %1247 = vmatpush1.bf16.msra.mxu0 0
      %1248 = vmatprep.subr.bf16.mxu0 0
      %1249 = vmatpush1.bf16.msra.mxu0 0
      %1250 = vmatprep.subr.bf16.mxu0 %v1201
      %1251 = vmatpush1.bf16.msra.mxu0 %v1200
      %1252 = vmatprep.subr.bf16.mxu0 %v1199
      %1253 = vmatpush1.bf16.msra.mxu0 %v1198
      %1254 = vmatprep.subr.bf16.mxu0 0
      %1255 = vmatpush2.bf16.msra.mxu0 0
      %1256 = vmatprep.subr.bf16.mxu0 0
      %1257 = vmatpush2.bf16.msra.mxu0 0
      %1258 = vmatprep.subr.bf16.mxu0 0
      %1259 = vmatpush2.bf16.msra.mxu0 0
      %1260 = vmatprep.subr.bf16.mxu0 0
      %1261 = vmatpush2.bf16.msra.mxu0 0
      %1262 = vmatprep.subr.bf16.mxu0 0
      %1263 = vmatpush2.bf16.msra.mxu0 0
      %1264 = vmatprep.subr.bf16.mxu0 0
      %1265 = vmatpush2.bf16.msra.mxu0 0
      %1266 = vmatprep.subr.bf16.mxu0 0
      %1267 = vmatpush2.bf16.msra.mxu0 0
      %1268 = vmatprep.subr.bf16.mxu0 0
      %1269 = vmatpush2.bf16.msra.mxu0 0
      %1270 = vmatprep.mubr.bf16.mxu0 0
      %1271 = vmatmul.mubr.bf16.gmra.mxu0 %v1233
      %v1272 = vpop.f32.mrf.mxu0
      %v1273 = vadd.f32 %v1205, %v1272
      %v1274 = vpop.f32.mrf.mxu0
      %v1275 = vadd.f32 %v1205, %v1274
      %v1276 = vpop.f32.mrf.mxu0
      %v1277 = vadd.f32 %v1210, %v1276
      %v1278 = vpop.f32.mrf.mxu0
      %v1279 = vadd.f32 %v1210, %v1278
      %1280 = vmatprep.mubr.bf16.mxu0 0
      %1281 = vmatmul.mubr.bf16.gmra.mxu0 %v1236
      %v1282 = vpop.f32.mrf.mxu0
      %v1283 = vadd.f32 %v1215, %v1282
      %v1284 = vpop.f32.mrf.mxu0
      %v1285 = vadd.f32 %v1215, %v1284
      %v1286 = vpop.f32.mrf.mxu0
      %v1287 = vadd.f32 %v1220, %v1286
      %v1288 = vpop.f32.mrf.mxu0
      %v1289 = vadd.f32 %v1220, %v1288
      %1290 = vdwg.mxu0
      %v1291 = vadd.f32 %v1273, %v227
      %v1292 = vadd.f32 %v1275, %v228
      %v1293 = vadd.f32 %v1277, %v229
      %v1294 = vadd.f32 %v1279, %v230
      %v1295 = vadd.f32 %v1283, %v231
      %v1296 = vadd.f32 %v1285, %v232
      %v1297 = vadd.f32 %v1287, %v233
      %v1298 = vadd.f32 %v1289, %v234
      %1299 = vst [vmem:[%s224] sm:$0xff] %v1291
      %1300 = vst [vmem:[%s224 + $0x8] sm:$0xff] %v1292
      %1301 = vst [vmem:[%s224 + $0x10] sm:$0xff] %v1293
      %1302 = vst [vmem:[%s224 + $0x18] sm:$0xff] %v1294
      %1303 = vst [vmem:[%s224 + $0x20] sm:$0xff] %v1295
      %1304 = vst [vmem:[%s224 + $0x28] sm:$0xff] %v1296
      %1305 = vst [vmem:[%s224 + $0x30] sm:$0xff] %v1297
      %1306 = vst [vmem:[%s224 + $0x38] sm:$0xff] %v1298
      %p1307 = scmp.lt.s32.totalorder %s16, 1
      %s1308 = scalar_select %p1307, %s16, 1
      %s1309 = smul.addr %s1308, 8
      %s1310 = smul.addr %s1309, 8
      %s1311 = scalar_lea.vmem %s5, %s1310
      // Predicated region
      $region41: #{attention_block_forward.1} parent=39 // pred_check
        %p1312 = pneg %p144
      $region42: #{attention_block_forward.1} parent=39 // pred_check_branch
        %1314 = sbr.rel (%p1312) target = $region44
      $region43: #{attention_block_forward.1} parent=39 // pred_region
        _
      $region44: #{attention_block_forward.1} parent=39 // pred_fallthru
        _
    $region40: #{attention_block_forward.1} parent=5 // pred_fallthru
      _
    %p1315 = scmp.le.s32.totalorder 2, %s11
    // Predicated region
    $region45: #{attention_block_forward.1} parent=5 // pred_check
      %p1316 = pneg %p1315
    $region46: #{attention_block_forward.1} parent=5 // pred_check_branch
      %1318 = sbr.rel (%p1316) target = $region48
    $region47: #{attention_block_forward.1} parent=5 // pred_region
      %s1319 = ssub.s32 %s11, 2
      // Predicated region
      $region49: #{attention_block_forward.1} parent=47 // pred_check
        %p1320 = pneg %p150
      $region50: #{attention_block_forward.1} parent=47 // pred_check_branch
        %1322 = sbr.rel (%p1320) target = $region52
      $region51: #{attention_block_forward.1} parent=47 // pred_region
        %p1323 = scmp.lt.s32.totalorder %s17, 1
        %s1324 = scalar_select %p1323, %s17, 1
        %s1325 = smul.addr %s1324, 8
        %s1326 = smul.addr %s1325, 8
        %s1327 = scalar_lea.vmem %s5, %s1326
      $region52: #{attention_block_forward.1} parent=47 // pred_fallthru
        _
    $region48: #{attention_block_forward.1} parent=5 // pred_fallthru
      _
  $region6: #{attention_block_forward.1} parent=0 // loop_footer
    %s15 = sadd.s32 1, %s11
  $region7: #{attention_block_forward.1} parent=0 // loop_footer_branch
    %10 = sbr.rel target = $region3
  $region8: #{attention_block_forward.1} parent=0 // loop_exit
    _

</llo_original>
